<compile_context>
chip_gen: v7x
topology: tpu7x:2x2x1
jax: 0.10.0
libtpu: 0.0.40
codegen_flags: <defaults>
</compile_context>

<pallas_src>
import jax
import jax.numpy as jnp
from jax.experimental import pallas as pl
from jax.experimental.pallas import tpu as pltpu


def _round_up(x, m):
    return ((x + m - 1) // m) * m


def _choose_row_tile(batch, max_tile):
    """Largest row tile (multiple of 8, <= max_tile) that keeps >=2 grid steps
    when the batch is big enough (v7x has 2 TensorCores to shard across)."""
    b8 = _round_up(max(batch, 1), 8)
    if b8 <= 8:
        return 8
    return min(max_tile, _round_up(pl.cdiv(b8, 2), 8))


def _mlp_kernel(x_ref, w1_ref, b1_ref, w2_ref, b2_ref, w3_ref, b3_ref, o_ref):
    """Fused 3-layer MLP for one (tm, D) tile of the batch."""
    # Layer 1 (MXU): (tm, D) @ (D, H), f32 accumulate, + bias, ReLU.
    h1 = jnp.dot(x_ref[...], w1_ref[...], preferred_element_type=jnp.float32)
    h1 = jnp.maximum(h1 + b1_ref[...], 0.0)

    # Layer 2 (MXU): (tm, H) @ (H, H).  The astype is a no-op for f32 weights
    # and re-narrows the activations when compute_dtype=bf16.
    h2 = jnp.dot(h1.astype(w2_ref.dtype), w2_ref[...],
                 preferred_element_type=jnp.float32)
    h2 = jnp.maximum(h2 + b2_ref[...], 0.0)

    # Layer 3 (VPU multiply + XLU lane reduce): an MXU matmul with a single
    # output column would waste >99% of the systolic array, so compute the
    # width-1 projection as sum(h2 * w3_row) along lanes.  b3 is an SMEM
    # scalar broadcast onto the (tm, 1) column.
    out = jnp.sum(h2 * w3_ref[...], axis=-1, keepdims=True) + b3_ref[0]
    o_ref[...] = out.astype(o_ref.dtype)


def output_layer_forward(x, params, *, max_row_tile=512,
                         compute_dtype=jnp.float32):
    """x: (B, input_size) float32.  Returns (B, 1) float32.

    max_row_tile: upper bound on the batch row tile.  512 is a good default
    for v6e/v7x; on v5e (single vector-store slot, no bf16 VALU) prefer
    128-256 when hidden_size is large.  If hidden_size grows into the
    thousands, pass compute_dtype=jnp.bfloat16 (and if needed raise
    pltpu.CompilerParams(vmem_limit_bytes=...)) so the resident weights stay
    inside v7x's 64 MiB VMEM.
    """
    w1, b1, w2, b2, w3, b3 = params
    x = jnp.asarray(x, jnp.float32)
    B, D = x.shape
    H = w1.shape[1]

    tm = _choose_row_tile(B, max_row_tile)
    n_tiles = pl.cdiv(B, tm)
    b_pad = n_tiles * tm
    if b_pad != B:
        # Ragged batch: zero-pad rows; padded rows are sliced off below.
        x = jnp.pad(x, ((0, b_pad - B), (0, 0)))

    cd = jnp.dtype(compute_dtype)
    xc = x.astype(cd)
    w1c = jnp.asarray(w1, cd)
    w2c = jnp.asarray(w2, cd)
    b1f = jnp.asarray(b1, jnp.float32).reshape(1, H)
    b2f = jnp.asarray(b2, jnp.float32).reshape(1, H)
    w3_row = jnp.asarray(w3, jnp.float32).reshape(1, H)   # lane-dense row
    b3_s = jnp.asarray(b3, jnp.float32).reshape(1)        # SMEM scalar

    flops = int(2 * b_pad * (D * H + H * H + H))
    bytes_accessed = int(
        xc.size * xc.dtype.itemsize
        + w1c.size * w1c.dtype.itemsize
        + w2c.size * w2c.dtype.itemsize
        + (b1f.size + b2f.size + w3_row.size + b3_s.size) * 4
        + b_pad * 4)

    out = pl.pallas_call(
        _mlp_kernel,
        out_shape=jax.ShapeDtypeStruct((b_pad, 1), jnp.float32),
        grid=(n_tiles,),
        in_specs=[
            pl.BlockSpec((tm, D), lambda i: (i, 0)),            # x row tile
            pl.BlockSpec((D, H), lambda i: (0, 0)),             # W1 (grid-invariant)
            pl.BlockSpec((1, H), lambda i: (0, 0)),             # b1
            pl.BlockSpec((H, H), lambda i: (0, 0)),             # W2 (grid-invariant)
            pl.BlockSpec((1, H), lambda i: (0, 0)),             # b2
            pl.BlockSpec((1, H), lambda i: (0, 0)),             # w3 as a row
            pl.BlockSpec(memory_space=pltpu.MemorySpace.SMEM),  # b3 scalar
        ],
        out_specs=pl.BlockSpec((tm, 1), lambda i: (i, 0)),
        compiler_params=pltpu.CompilerParams(
            dimension_semantics=("parallel",),
        ),
        cost_estimate=pl.CostEstimate(
            flops=flops, transcendentals=0, bytes_accessed=bytes_accessed),
    )(xc, w1c, b1f, w2c, b2f, w3_row, b3_s)

    return out[:B] if b_pad != B else out


def init_params(key, input_size, hidden_size):
    """Deterministic init mimicking nn.Linear (uniform +/- 1/sqrt(fan_in))."""
    ks = jax.random.split(key, 6)

    def lin(kw, kb, fan_in, fan_out):
        bound = 1.0 / jnp.sqrt(fan_in)
        w = jax.random.uniform(kw, (fan_in, fan_out), jnp.float32, -bound, bound)
        b = jax.random.uniform(kb, (1, fan_out), jnp.float32, -bound, bound)
        return w, b

    w1, b1 = lin(ks[0], ks[1], input_size, hidden_size)
    w2, b2 = lin(ks[2], ks[3], hidden_size, hidden_size)
    w3, b3 = lin(ks[4], ks[5], hidden_size, 1)
    return (w1, b1, w2, b2, w3, b3)


def reference_forward(x, params):
    """Pure-JAX reference of OutputLayer.forward for verification."""
    w1, b1, w2, b2, w3, b3 = params
    h1 = jax.nn.relu(x @ w1 + b1)
    h2 = jax.nn.relu(h1 @ w2 + b2)
    return h2 @ w3 + b3


if __name__ == "__main__":
    input_size = 32
    hidden_size = 32
    batch = 16

    key = jax.random.PRNGKey(0)
    k_x, k_p = jax.random.split(key)

    x = jax.random.normal(k_x, (batch, input_size), dtype=jnp.float32)
    params = init_params(k_p, input_size, hidden_size)

    out = output_layer_forward(x, params)
    out = jax.block_until_ready(out)

    ref = reference_forward(x, params)
    assert out.shape == (batch, 1), out.shape
    assert jnp.allclose(out, ref, atol=1e-5, rtol=1e-5), (
        float(jnp.max(jnp.abs(out - ref)))
    )

    print("KERNEL_OK")
</pallas_src>

<mosaic_0001>
module attributes {stable_mosaic.version = 11 : i64} {
  func.func @_mlp_kernel(%arg0: i32, %arg1: memref<8x32xf32, #tpu.memory_space<vmem>>, %arg2: memref<32x32xf32, #tpu.memory_space<vmem>>, %arg3: memref<1x32xf32, #tpu.memory_space<vmem>>, %arg4: memref<32x32xf32, #tpu.memory_space<vmem>>, %arg5: memref<1x32xf32, #tpu.memory_space<vmem>>, %arg6: memref<1x32xf32, #tpu.memory_space<vmem>>, %arg7: memref<1xf32, #tpu.memory_space<smem>>, %arg8: memref<8x1xf32, #tpu.memory_space<vmem>>) attributes {dimension_semantics = [#tpu.dimension_semantics<parallel>], iteration_bounds = array<i64: 2>, scalar_prefetch = 0 : i64, scratch_operands = 0 : i64, tpu.core_type = #tpu.core_type<tc>, window_params = [{transform_indices = @transform_0, window_bounds = array<i64: 8, 32>}, {pipeline_mode = #tpu.pipeline_mode<synchronous>, transform_indices = @transform_1, window_bounds = array<i64: 32, 32>}, {pipeline_mode = #tpu.pipeline_mode<synchronous>, transform_indices = @transform_2, window_bounds = array<i64: 1, 32>}, {pipeline_mode = #tpu.pipeline_mode<synchronous>, transform_indices = @transform_3, window_bounds = array<i64: 32, 32>}, {pipeline_mode = #tpu.pipeline_mode<synchronous>, transform_indices = @transform_4, window_bounds = array<i64: 1, 32>}, {pipeline_mode = #tpu.pipeline_mode<synchronous>, transform_indices = @transform_5, window_bounds = array<i64: 1, 32>}, {transform_indices = @transform_6, window_bounds = array<i64: 1>}, {transform_indices = @transform_7, window_bounds = array<i64: 8, 1>}]} {
    %c0 = arith.constant 0 : index
    %c0_0 = arith.constant 0 : index
    %0 = vector.load %arg1[%c0, %c0_0] : memref<8x32xf32, #tpu.memory_space<vmem>>, vector<8x32xf32>
    %c0_1 = arith.constant 0 : index
    %c0_2 = arith.constant 0 : index
    %1 = vector.load %arg2[%c0_1, %c0_2] : memref<32x32xf32, #tpu.memory_space<vmem>>, vector<32x32xf32>
    %cst = arith.constant dense<0.000000e+00> : vector<8x32xf32>
    %2 = tpu.matmul %0, %1, %cst {dimension_numbers = #tpu.dot_dimension_numbers<[1], [0], [0], [1], [0, 0, 1, 1], [], []>} : vector<8x32xf32>, vector<32x32xf32>, vector<8x32xf32> -> vector<8x32xf32>
    %c0_3 = arith.constant 0 : index
    %c0_4 = arith.constant 0 : index
    %3 = vector.load %arg3[%c0_3, %c0_4] : memref<1x32xf32, #tpu.memory_space<vmem>>, vector<1x32xf32>
    %4 = vector.broadcast %3 : vector<1x32xf32> to vector<8x32xf32>
    %5 = arith.addf %2, %4 : vector<8x32xf32>
    %cst_5 = arith.constant 0.000000e+00 : f32
    %6 = vector.broadcast %cst_5 : f32 to vector<8x32xf32>
    %7 = arith.maximumf %5, %6 : vector<8x32xf32>
    %c0_6 = arith.constant 0 : index
    %c0_7 = arith.constant 0 : index
    %8 = vector.load %arg4[%c0_6, %c0_7] : memref<32x32xf32, #tpu.memory_space<vmem>>, vector<32x32xf32>
    %cst_8 = arith.constant dense<0.000000e+00> : vector<8x32xf32>
    %9 = tpu.matmul %7, %8, %cst_8 {dimension_numbers = #tpu.dot_dimension_numbers<[1], [0], [0], [1], [0, 0, 1, 1], [], []>} : vector<8x32xf32>, vector<32x32xf32>, vector<8x32xf32> -> vector<8x32xf32>
    %c0_9 = arith.constant 0 : index
    %c0_10 = arith.constant 0 : index
    %10 = vector.load %arg5[%c0_9, %c0_10] : memref<1x32xf32, #tpu.memory_space<vmem>>, vector<1x32xf32>
    %11 = vector.broadcast %10 : vector<1x32xf32> to vector<8x32xf32>
    %12 = arith.addf %9, %11 : vector<8x32xf32>
    %cst_11 = arith.constant 0.000000e+00 : f32
    %13 = vector.broadcast %cst_11 : f32 to vector<8x32xf32>
    %14 = arith.maximumf %12, %13 : vector<8x32xf32>
    %c0_12 = arith.constant 0 : index
    %c0_13 = arith.constant 0 : index
    %15 = vector.load %arg6[%c0_12, %c0_13] : memref<1x32xf32, #tpu.memory_space<vmem>>, vector<1x32xf32>
    %16 = vector.broadcast %15 : vector<1x32xf32> to vector<8x32xf32>
    %17 = arith.mulf %14, %16 : vector<8x32xf32>
    %cst_14 = arith.constant dense<0.000000e+00> : vector<8xf32>
    %18 = vector.multi_reduction <add>, %17, %cst_14 [1] : vector<8x32xf32> to vector<8xf32>
    %19 = vector.shape_cast %18 : vector<8xf32> to vector<8x1xf32>
    %c0_15 = arith.constant 0 : index
    %20 = memref.load %arg7[%c0_15] : memref<1xf32, #tpu.memory_space<smem>>
    %21 = vector.broadcast %20 : f32 to vector<8x1xf32>
    %22 = arith.addf %19, %21 : vector<8x1xf32>
    %c0_16 = arith.constant 0 : index
    %c0_17 = arith.constant 0 : index
    %23 = vector.load %arg8[%c0_16, %c0_17] : memref<8x1xf32, #tpu.memory_space<vmem>>, vector<8x1xf32>
    tpu.vector_store %arg8[%c0_16, %c0_17], %22 {strides = array<i32>} : memref<8x1xf32, #tpu.memory_space<vmem>>, vector<8x1xf32>,
    return
  }
  func.func @transform_0(%arg0: i32) -> (i32, i32) {
    %c0_i32 = arith.constant 0 : i32
    %c0_i32_0 = arith.constant 0 : i32
    return %arg0, %c0_i32 : i32, i32
  }
  func.func @transform_1(%arg0: i32) -> (i32, i32) {
    %c0_i32 = arith.constant 0 : i32
    %c0_i32_0 = arith.constant 0 : i32
    %c0_i32_1 = arith.constant 0 : i32
    return %c0_i32, %c0_i32_0 : i32, i32
  }
  func.func @transform_2(%arg0: i32) -> (i32, i32) {
    %c0_i32 = arith.constant 0 : i32
    %c0_i32_0 = arith.constant 0 : i32
    %c0_i32_1 = arith.constant 0 : i32
    return %c0_i32, %c0_i32_0 : i32, i32
  }
  func.func @transform_3(%arg0: i32) -> (i32, i32) {
    %c0_i32 = arith.constant 0 : i32
    %c0_i32_0 = arith.constant 0 : i32
    %c0_i32_1 = arith.constant 0 : i32
    return %c0_i32, %c0_i32_0 : i32, i32
  }
  func.func @transform_4(%arg0: i32) -> (i32, i32) {
    %c0_i32 = arith.constant 0 : i32
    %c0_i32_0 = arith.constant 0 : i32
    %c0_i32_1 = arith.constant 0 : i32
    return %c0_i32, %c0_i32_0 : i32, i32
  }
  func.func @transform_5(%arg0: i32) -> (i32, i32) {
    %c0_i32 = arith.constant 0 : i32
    %c0_i32_0 = arith.constant 0 : i32
    %c0_i32_1 = arith.constant 0 : i32
    return %c0_i32, %c0_i32_0 : i32, i32
  }
  func.func @transform_6(%arg0: i32) -> i32 {
    %c0_i32 = arith.constant 0 : i32
    %c0_i32_0 = arith.constant 0 : i32
    return %c0_i32 : i32
  }
  func.func @transform_7(%arg0: i32) -> (i32, i32) {
    %c0_i32 = arith.constant 0 : i32
    %c0_i32_0 = arith.constant 0 : i32
    return %arg0, %c0_i32 : i32, i32
  }
}

</mosaic_0001>

<llo_original>
// kernel: tpu_custom_call.1
$region0: #{tpu_custom_call.1}
  #allocation0 [shape = 'u32[]', space=smem, size = 0x4, offset = 0x4, fixed_abs, tag = 'smem constant byte address 0x4 - core index']
  #allocation1 [shape = 'u32[144,128]{1,0:T(1,128)}', space=vmem, size = 0x12000, scoped, tag = 'internal scratch']
  #allocation2 [shape = 'f32[1]{0:T(128)S(6)}', space=smem, size = 0x200, scoped, tag = 'scoped memory for tpu_custom_call.1']
  %s0 = inlined_call_operand.hbm [shape: f32[16,32], index: 0, kind: input, shape index: {}]
  %s1 = inlined_call_operand.hbm [shape: f32[32,32], index: 1, kind: input, shape index: {}]
  %s2 = inlined_call_operand.vmem [shape: f32[1,32], index: 2, kind: input, shape index: {}]
  %s3 = inlined_call_operand.hbm [shape: f32[32,32], index: 3, kind: input, shape index: {}]
  %s4 = inlined_call_operand.vmem [shape: f32[1,32], index: 4, kind: input, shape index: {}]
  %s5 = inlined_call_operand.vmem [shape: f32[1,32], index: 5, kind: input, shape index: {}]
  %s6 = inlined_call_operand.<no memory space> [shape: f32[1], index: 6, kind: input, shape index: {}]
  %s7 = inlined_call_operand.vmem [shape: f32[16,1], index: 7, kind: output, shape index: {}]
  %s8 = sld [smem:[#allocation0]]
  $region73: #{tpu_custom_call.1} parent=0
    _
  %s10 = ssub.s32 1, %s8
  %s11 = scalar_select 0, %s10, %s8
  %12 = sst [smem:[#allocation2]] %s6
  $region1: #{tpu_custom_call.1} parent=0
    #allocation3 [shape = 'u8[8192]{0}', space=vmem, size = 0x2000, scoped, tag = 'input window, operand 0']
    #allocation4 [shape = 's32[2]{0}', space=sflag, size = 0x8, scoped, tag = 'scoped memory for tpu_custom_call.1']
    #allocation5 [shape = 'u8[16384]{0}', space=vmem, size = 0x4000, scoped, tag = 'input window, operand 1, single buffered']
    #allocation6 [shape = 's32[1]{0}', space=sflag, size = 0x4, scoped, tag = 'scoped memory for tpu_custom_call.1']
    #allocation7 [shape = 'u8[16384]{0}', space=vmem, size = 0x4000, scoped, tag = 'input window, operand 3, single buffered']
    %13 = vsyncpa [#allocation4], 0
    %s14 = scalar_lea.sflag [#allocation4], 1
    %15 = vsyncpa %s14, 0
    %16 = vsyncpa [#allocation6], 0
    loop: start=0, step=1, limit=4
    $region2: #{tpu_custom_call.1} parent=1 // loop_pre_header
      _
    $region3: #{tpu_custom_call.1} parent=1 // loop_header
      %s18 = sphi 0, %s22
      %p19 = scmp.ge.s32.totalorder %s18, 4
      %s28 = sphi 0, %s30
      %s31 = sphi 0, %s28
      %s32 = sphi 0, %s31
      %s48 = sphi 0, %s32
      %s52 = sphi 0, %s52
      %s54 = sphi 0, %s52
      %s55 = sphi 0, %s54
      %s69 = sphi 0, %s55
      %s73 = sphi 0, %s73
      %s75 = sphi 0, %s73
      %s76 = sphi 0, %s75
      %s90 = sphi 0, %s76
      %s94 = sphi 0, %s94
      %s96 = sphi 0, %s94
      %s97 = sphi 0, %s96
      %s111 = sphi 0, %s97
      %s115 = sphi 0, %s115
      %s117 = sphi 0, %s115
      %s118 = sphi 0, %s117
      %s132 = sphi 0, %s118
      %s136 = sphi 0, %s136
      %s138 = sphi 0, %s136
      %s139 = sphi 0, %s138
      %s153 = sphi 0, %s139
      %s157 = sphi 0, %s157
      %s159 = sphi 0, %s157
      %s160 = sphi 0, %s159
      %s174 = sphi 0, %s160
      %s180 = sphi 0, %s182
      %s183 = sphi 0, %s180
      %s184 = sphi 0, %s183
      %s200 = sphi 0, %s184
    $region4: #{tpu_custom_call.1} parent=1 // loop_header_branch
      %21 = sbr.rel (%p19) target = $region8
    $region5: #{tpu_custom_call.1} parent=1 // loop_body
      %s23 = ssub.s32 %s18, 1
      %s24 = ssub.s32 %s18, 2
      %s25 = sadd.s32 %s18, 1
      %s26 = ssub.s32 %s18, %s25
      %p27 = scmp.eq.s32.totalorder %s26, 0
      %s29 = sadd.s32 %s28, 1
      %s30 = scalar_select %p27, %s28, %s29
      %p33 = pneg %p27
      %p34 = scmp.eq.s32.totalorder %s18, 1
      %p35 = por %p33, %p34
      %p36 = scmp.ne.s32.totalorder %s28, %s31
      %p37 = scmp.eq.s32.totalorder %s18, 0
      %p38 = por %p36, %p37
      %p39 = scmp.ne.s32.totalorder %s28, %s31
      %p40 = scmp.eq.s32.totalorder %s23, 1
      %p41 = por %p39, %p40
      %p42 = scmp.ne.s32.totalorder %s31, %s32
      %p43 = scmp.eq.s32.totalorder %s23, 0
      %p44 = por %p42, %p43
      %p45 = scmp.ne.s32.totalorder %s31, %s32
      %p46 = scmp.eq.s32.totalorder %s24, 1
      %p47 = por %p45, %p46
      %p49 = scmp.ne.s32.totalorder %s32, %s48
      %p50 = scmp.eq.s32.totalorder %s24, 0
      %p51 = por %p49, %p50
      %s53 = sadd.s32 %s52, 1
      %p56 = scmp.eq.s32.totalorder %s18, 1
      %p57 = scmp.ne.s32.totalorder %s52, %s54
      %p58 = scmp.eq.s32.totalorder %s18, 0
      %p59 = por %p57, %p58
      %p60 = scmp.ne.s32.totalorder %s52, %s54
      %p61 = scmp.eq.s32.totalorder %s23, 1
      %p62 = por %p60, %p61
      %p63 = scmp.ne.s32.totalorder %s54, %s55
      %p64 = scmp.eq.s32.totalorder %s23, 0
      %p65 = por %p63, %p64
      %p66 = scmp.ne.s32.totalorder %s54, %s55
      %p67 = scmp.eq.s32.totalorder %s24, 1
      %p68 = por %p66, %p67
      %p70 = scmp.ne.s32.totalorder %s55, %s69
      %p71 = scmp.eq.s32.totalorder %s24, 0
      %p72 = por %p70, %p71
      %s74 = sadd.s32 %s73, 1
      %p77 = scmp.eq.s32.totalorder %s18, 1
      %p78 = scmp.ne.s32.totalorder %s73, %s75
      %p79 = scmp.eq.s32.totalorder %s18, 0
      %p80 = por %p78, %p79
      %p81 = scmp.ne.s32.totalorder %s73, %s75
      %p82 = scmp.eq.s32.totalorder %s23, 1
      %p83 = por %p81, %p82
      %p84 = scmp.ne.s32.totalorder %s75, %s76
      %p85 = scmp.eq.s32.totalorder %s23, 0
      %p86 = por %p84, %p85
      %p87 = scmp.ne.s32.totalorder %s75, %s76
      %p88 = scmp.eq.s32.totalorder %s24, 1
      %p89 = por %p87, %p88
      %p91 = scmp.ne.s32.totalorder %s76, %s90
      %p92 = scmp.eq.s32.totalorder %s24, 0
      %p93 = por %p91, %p92
      %s95 = sadd.s32 %s94, 1
      %p98 = scmp.eq.s32.totalorder %s18, 1
      %p99 = scmp.ne.s32.totalorder %s94, %s96
      %p100 = scmp.eq.s32.totalorder %s18, 0
      %p101 = por %p99, %p100
      %p102 = scmp.ne.s32.totalorder %s94, %s96
      %p103 = scmp.eq.s32.totalorder %s23, 1
      %p104 = por %p102, %p103
      %p105 = scmp.ne.s32.totalorder %s96, %s97
      %p106 = scmp.eq.s32.totalorder %s23, 0
      %p107 = por %p105, %p106
      %p108 = scmp.ne.s32.totalorder %s96, %s97
      %p109 = scmp.eq.s32.totalorder %s24, 1
      %p110 = por %p108, %p109
      %p112 = scmp.ne.s32.totalorder %s97, %s111
      %p113 = scmp.eq.s32.totalorder %s24, 0
      %p114 = por %p112, %p113
      %s116 = sadd.s32 %s115, 1
      %p119 = scmp.eq.s32.totalorder %s18, 1
      %p120 = scmp.ne.s32.totalorder %s115, %s117
      %p121 = scmp.eq.s32.totalorder %s18, 0
      %p122 = por %p120, %p121
      %p123 = scmp.ne.s32.totalorder %s115, %s117
      %p124 = scmp.eq.s32.totalorder %s23, 1
      %p125 = por %p123, %p124
      %p126 = scmp.ne.s32.totalorder %s117, %s118
      %p127 = scmp.eq.s32.totalorder %s23, 0
      %p128 = por %p126, %p127
      %p129 = scmp.ne.s32.totalorder %s117, %s118
      %p130 = scmp.eq.s32.totalorder %s24, 1
      %p131 = por %p129, %p130
      %p133 = scmp.ne.s32.totalorder %s118, %s132
      %p134 = scmp.eq.s32.totalorder %s24, 0
      %p135 = por %p133, %p134
      %s137 = sadd.s32 %s136, 1
      %p140 = scmp.eq.s32.totalorder %s18, 1
      %p141 = scmp.ne.s32.totalorder %s136, %s138
      %p142 = scmp.eq.s32.totalorder %s18, 0
      %p143 = por %p141, %p142
      %p144 = scmp.ne.s32.totalorder %s136, %s138
      %p145 = scmp.eq.s32.totalorder %s23, 1
      %p146 = por %p144, %p145
      %p147 = scmp.ne.s32.totalorder %s138, %s139
      %p148 = scmp.eq.s32.totalorder %s23, 0
      %p149 = por %p147, %p148
      %p150 = scmp.ne.s32.totalorder %s138, %s139
      %p151 = scmp.eq.s32.totalorder %s24, 1
      %p152 = por %p150, %p151
      %p154 = scmp.ne.s32.totalorder %s139, %s153
      %p155 = scmp.eq.s32.totalorder %s24, 0
      %p156 = por %p154, %p155
      %s158 = sadd.s32 %s157, 1
      %p161 = scmp.eq.s32.totalorder %s18, 1
      %p162 = scmp.ne.s32.totalorder %s157, %s159
      %p163 = scmp.eq.s32.totalorder %s18, 0
      %p164 = por %p162, %p163
      %p165 = scmp.ne.s32.totalorder %s157, %s159
      %p166 = scmp.eq.s32.totalorder %s23, 1
      %p167 = por %p165, %p166
      %p168 = scmp.ne.s32.totalorder %s159, %s160
      %p169 = scmp.eq.s32.totalorder %s23, 0
      %p170 = por %p168, %p169
      %p171 = scmp.ne.s32.totalorder %s159, %s160
      %p172 = scmp.eq.s32.totalorder %s24, 1
      %p173 = por %p171, %p172
      %p175 = scmp.ne.s32.totalorder %s160, %s174
      %p176 = scmp.eq.s32.totalorder %s24, 0
      %p177 = por %p175, %p176
      %s178 = ssub.s32 %s18, %s25
      %p179 = scmp.eq.s32.totalorder %s178, 0
      %s181 = sadd.s32 %s180, 1
      %s182 = scalar_select %p179, %s180, %s181
      %p185 = pneg %p179
      %p186 = scmp.eq.s32.totalorder %s18, 1
      %p187 = por %p185, %p186
      %p188 = scmp.ne.s32.totalorder %s180, %s183
      %p189 = scmp.eq.s32.totalorder %s18, 0
      %p190 = por %p188, %p189
      %p191 = scmp.ne.s32.totalorder %s180, %s183
      %p192 = scmp.eq.s32.totalorder %s23, 1
      %p193 = por %p191, %p192
      %p194 = scmp.ne.s32.totalorder %s183, %s184
      %p195 = scmp.eq.s32.totalorder %s23, 0
      %p196 = por %p194, %p195
      %p197 = scmp.ne.s32.totalorder %s183, %s184
      %p198 = scmp.eq.s32.totalorder %s24, 1
      %p199 = por %p197, %p198
      %p201 = scmp.ne.s32.totalorder %s184, %s200
      %p202 = scmp.eq.s32.totalorder %s24, 0
      %p203 = por %p201, %p202
      %p204 = scmp.le.s32.totalorder 1, %s18
      %p205 = scmp.lt.s32.totalorder %s18, 3
      %p206 = pnand %p204, %p205
      %p207 = pneg %p206
      // Predicated region
      $region9: #{tpu_custom_call.1} parent=5 // pred_check
        _
      $region10: #{tpu_custom_call.1} parent=5 // pred_check_branch
        %209 = sbr.rel (%p206) target = $region12
      $region11: #{tpu_custom_call.1} parent=5 // pred_region
        %s210 = ssub.s32 %s18, 1
        // Predicated region
        $region13: #{tpu_custom_call.1} parent=11 // pred_check
          %p211 = pneg %p65
        $region14: #{tpu_custom_call.1} parent=11 // pred_check_branch
          %213 = sbr.rel (%p211) target = $region16
        $region15: #{tpu_custom_call.1} parent=11 // pred_region
          %s215 = ssub.s32 512, 512
          %216 = vsyncadd [#allocation6], %s215
          %s217 = sshll.u32 [#allocation5], 4
          %s218 = int_to_ptr.vmem [resolvable:$true] %s217
          %223 = dma.hbm_to_vmem [thread:$0]  %s1, 512, %s218, [#allocation6], 128, 128, 8
        $region16: #{tpu_custom_call.1} parent=11 // pred_fallthru
          _
        // Predicated region
        $region17: #{tpu_custom_call.1} parent=11 // pred_check
          %p224 = pneg %p86
        $region18: #{tpu_custom_call.1} parent=11 // pred_check_branch
          %226 = sbr.rel (%p224) target = $region20
        $region19: #{tpu_custom_call.1} parent=11 // pred_region
          _
        $region20: #{tpu_custom_call.1} parent=11 // pred_fallthru
          _
        // Predicated region
        $region21: #{tpu_custom_call.1} parent=11 // pred_check
          %p227 = pneg %p107
        $region22: #{tpu_custom_call.1} parent=11 // pred_check_branch
          %229 = sbr.rel (%p227) target = $region24
        $region23: #{tpu_custom_call.1} parent=11 // pred_region
          %s231 = ssub.s32 512, 512
          %232 = vsyncadd [#allocation6], %s231
          %s233 = sshll.u32 [#allocation7], 4
          %s234 = int_to_ptr.vmem [resolvable:$true] %s233
          %239 = dma.hbm_to_vmem [thread:$0]  %s3, 512, %s234, [#allocation6], 128, 128, 8
        $region24: #{tpu_custom_call.1} parent=11 // pred_fallthru
          _
        // Predicated region
        $region25: #{tpu_custom_call.1} parent=11 // pred_check
          %p240 = pneg %p128
        $region26: #{tpu_custom_call.1} parent=11 // pred_check_branch
          %242 = sbr.rel (%p240) target = $region28
        $region27: #{tpu_custom_call.1} parent=11 // pred_region
          _
        $region28: #{tpu_custom_call.1} parent=11 // pred_fallthru
          _
        // Predicated region
        $region29: #{tpu_custom_call.1} parent=11 // pred_check
          %p243 = pneg %p149
        $region30: #{tpu_custom_call.1} parent=11 // pred_check_branch
          %245 = sbr.rel (%p243) target = $region32
        $region31: #{tpu_custom_call.1} parent=11 // pred_region
          _
        $region32: #{tpu_custom_call.1} parent=11 // pred_fallthru
          _
        // Predicated region
        $region33: #{tpu_custom_call.1} parent=11 // pred_check
          %p246 = pneg %p170
        $region34: #{tpu_custom_call.1} parent=11 // pred_check_branch
          %248 = sbr.rel (%p246) target = $region36
        $region35: #{tpu_custom_call.1} parent=11 // pred_region
          _
        $region36: #{tpu_custom_call.1} parent=11 // pred_fallthru
          _
      $region12: #{tpu_custom_call.1} parent=5 // pred_fallthru
        _
      %p249 = scmp.lt.s32.totalorder %s18, 2
      // Predicated region
      $region37: #{tpu_custom_call.1} parent=5 // pred_check
        %p250 = pneg %p249
      $region38: #{tpu_custom_call.1} parent=5 // pred_check_branch
        %252 = sbr.rel (%p250) target = $region40
      $region39: #{tpu_custom_call.1} parent=5 // pred_region
        // Predicated region
        $region41: #{tpu_custom_call.1} parent=39 // pred_check
          %p253 = pneg %p38
        $region42: #{tpu_custom_call.1} parent=39 // pred_check_branch
          %255 = sbr.rel (%p253) target = $region44
        $region43: #{tpu_custom_call.1} parent=39 // pred_region
          %s256 = sand.u32 %s28, 1
          %s257 = scalar_lea.sflag [#allocation4], %s256
          %s258 = sand.u32 %s28, 1
          %s259 = smul.addr %s258, 8
          %s260 = scalar_lea.vmem [#allocation3], %s259
          %s262 = ssub.s32 128, 128
          %263 = vsyncadd %s257, %s262
          %s264 = smul.addr %s18, 128
          %s265 = scalar_lea.hbm %s0, %s264
          %s267 = sshll.u32 %s260, 4
          %s268 = int_to_ptr.vmem [resolvable:$true] %s267
          %270 = dma.hbm_to_vmem [thread:$0]  %s265, 128, %s268, %s257
        $region44: #{tpu_custom_call.1} parent=39 // pred_fallthru
          _
      $region40: #{tpu_custom_call.1} parent=5 // pred_fallthru
        _
      %p271 = scmp.le.s32.totalorder 1, %s18
      %p272 = scmp.lt.s32.totalorder %s18, 3
      %p273 = pnand %p271, %p272
      %p274 = pneg %p273
      // Predicated region
      $region45: #{tpu_custom_call.1} parent=5 // pred_check
        _
      $region46: #{tpu_custom_call.1} parent=5 // pred_check_branch
        %276 = sbr.rel (%p273) target = $region48
      $region47: #{tpu_custom_call.1} parent=5 // pred_region
        %s277 = ssub.s32 %s18, 1
        %s278 = sand.u32 %s31, 1
        %s279 = scalar_lea.sflag [#allocation4], %s278
        %s280 = sand.u32 %s31, 1
        %s281 = smul.addr %s280, 8
        %s282 = scalar_lea.vmem [#allocation3], %s281
        // Predicated region
        $region49: #{tpu_custom_call.1} parent=47 // pred_check
          %p283 = pneg %p44
        $region50: #{tpu_custom_call.1} parent=47 // pred_check_branch
          %285 = sbr.rel (%p283) target = $region52
        $region51: #{tpu_custom_call.1} parent=47 // pred_region
          %286 = dma.done %s279, 128
        $region52: #{tpu_custom_call.1} parent=47 // pred_fallthru
          _
        // Predicated region
        $region53: #{tpu_custom_call.1} parent=47 // pred_check
          %p287 = pneg %p65
        $region54: #{tpu_custom_call.1} parent=47 // pred_check_branch
          %289 = sbr.rel (%p287) target = $region56
        $region55: #{tpu_custom_call.1} parent=47 // pred_region
          %290 = dma.done [#allocation6], 512
        $region56: #{tpu_custom_call.1} parent=47 // pred_fallthru
          _
        // Predicated region
        $region57: #{tpu_custom_call.1} parent=47 // pred_check
          %p291 = pneg %p107
        $region58: #{tpu_custom_call.1} parent=47 // pred_check_branch
          %293 = sbr.rel (%p291) target = $region60
        $region59: #{tpu_custom_call.1} parent=47 // pred_region
          %294 = dma.done [#allocation6], 512
        $region60: #{tpu_custom_call.1} parent=47 // pred_fallthru
          _
        %s295 = sand.u32 %s31, 1
        %s296 = scalar_lea.sflag [#allocation4], %s295
        %s297 = sand.u32 %s31, 1
        %s298 = smul.addr %s297, 8
        %s299 = scalar_lea.vmem [#allocation3], %s298
        %p300 = pneg %p44
        %p301 = pneg %p41
        %p302 = pneg %p65
        %p303 = pneg %p62
        %p304 = pneg %p86
        %p305 = pneg %p83
        %p306 = pneg %p107
        %p307 = pneg %p104
        %p308 = pneg %p128
        %p309 = pneg %p125
        %p310 = pneg %p149
        %p311 = pneg %p146
        %p312 = pneg %p170
        %p313 = pneg %p167
        %p314 = pneg %p196
        %p315 = pneg %p193
        %p316 = scmp.lt.s32.totalorder %s23, 1
        %s317 = scalar_select %p316, %s23, 1
        %s318 = smul.addr %s317, 8
        %s319 = scalar_lea.vmem %s7, %s318
        %p320 = scmp.lt.s32.totalorder %s23, 1
        %s321 = scalar_select %p320, %s23, 1
        %s322 = smul.addr %s321, 8
        %s323 = scalar_lea.vmem %s7, %s322
        %v324 = vld [vmem:[%s282] sm:$0xff]
        %v325 = vld [vmem:[#allocation5] sm:$0xff]
        %v326 = vld [vmem:[#allocation5 + $0x8] sm:$0xff]
        %v327 = vld [vmem:[#allocation5 + $0x10] sm:$0xff]
        %v328 = vld [vmem:[#allocation5 + $0x18] sm:$0xff]
        %v329 = vld [vmem:[%s2] sm:$0x1]
        %v331 = vlaneseq
        %v332 = vshrl.u32 %v331, 7
        %v333 = vsub.s32 0, %v332
        %v334 = vrot.slane %v329, %v333
        %vm336 = vcmask 261120
        %v338 = vsel %vm336, %v324, 0
        %340 = vmatprep.subr.mxu0 0.0
        %341 = vmatpush1.msra.mxu0 %v325
        %342 = vmatprep.subr.mxu0 0.0
        %343 = vmatpush1.msra.mxu0 %v326
        %344 = vmatprep.subr.mxu0 0.0
        %345 = vmatpush1.msra.mxu0 %v327
        %346 = vmatprep.subr.mxu0 0.0
        %347 = vmatpush1.msra.mxu0 %v328
        %348 = vmatprep.subr.mxu0 0.0
        %349 = vmatpush1.msra.mxu0 0.0
        %350 = vmatprep.subr.mxu0 0.0
        %351 = vmatpush1.msra.mxu0 0.0
        %352 = vmatprep.subr.mxu0 0.0
        %353 = vmatpush1.msra.mxu0 0.0
        %354 = vmatprep.subr.mxu0 0.0
        %355 = vmatpush1.msra.mxu0 0.0
        %356 = vmatprep.subr.mxu0 0.0
        %357 = vmatpush1.msra.mxu0 0.0
        %358 = vmatprep.subr.mxu0 0.0
        %359 = vmatpush1.msra.mxu0 0.0
        %360 = vmatprep.subr.mxu0 0.0
        %361 = vmatpush1.msra.mxu0 0.0
        %362 = vmatprep.subr.mxu0 0.0
        %363 = vmatpush1.msra.mxu0 0.0
        %364 = vmatprep.subr.mxu0 0.0
        %365 = vmatpush1.msra.mxu0 0.0
        %366 = vmatprep.subr.mxu0 0.0
        %367 = vmatpush1.msra.mxu0 0.0
        %368 = vmatprep.subr.mxu0 0.0
        %369 = vmatpush1.msra.mxu0 0.0
        %370 = vmatprep.subr.mxu0 0.0
        %371 = vmatpush1.msra.mxu0 0.0
        %372 = vmatprep.subr.mxu0 0.0
        %373 = vmatpush1.msra.mxu0 0.0
        %374 = vmatprep.subr.mxu0 0.0
        %375 = vmatpush1.msra.mxu0 0.0
        %376 = vmatprep.subr.mxu0 0.0
        %377 = vmatpush1.msra.mxu0 0.0
        %378 = vmatprep.subr.mxu0 0.0
        %379 = vmatpush1.msra.mxu0 0.0
        %380 = vmatprep.subr.mxu0 0.0
        %381 = vmatpush1.msra.mxu0 0.0
        %382 = vmatprep.subr.mxu0 0.0
        %383 = vmatpush1.msra.mxu0 0.0
        %384 = vmatprep.subr.mxu0 0.0
        %385 = vmatpush1.msra.mxu0 0.0
        %386 = vmatprep.subr.mxu0 0.0
        %387 = vmatpush1.msra.mxu0 0.0
        %388 = vmatprep.subr.mxu0 0.0
        %389 = vmatpush1.msra.mxu0 0.0
        %390 = vmatprep.subr.mxu0 0.0
        %391 = vmatpush1.msra.mxu0 0.0
        %392 = vmatprep.subr.mxu0 0.0
        %393 = vmatpush1.msra.mxu0 0.0
        %394 = vmatprep.subr.mxu0 0.0
        %395 = vmatpush1.msra.mxu0 0.0
        %396 = vmatprep.subr.mxu0 0.0
        %397 = vmatpush1.msra.mxu0 0.0
        %398 = vmatprep.subr.mxu0 0.0
        %399 = vmatpush1.msra.mxu0 0.0
        %400 = vmatprep.subr.mxu0 0.0
        %401 = vmatpush1.msra.mxu0 0.0
        %402 = vmatprep.subr.mxu0 0.0
        %403 = vmatpush1.msra.mxu0 0.0
        %404 = vmatprep.mubr.f32.mxu0 0.0
        %405 = vmatmul.mubr.f32.gmra.mrb[0].mxu0 %v338
        %v406 = vpop.f32.mrb[0].mxu0
        %v407 = vadd.f32 %v334, %v406
        %v408 = vpop.f32.mrb[0].mxu0
        %409 = vdwg.mxu0
        %v410 = vmax.f32 %v407, 0.0
        %v411 = vld [vmem:[#allocation7] sm:$0xff]
        %v412 = vld [vmem:[#allocation7 + $0x8] sm:$0xff]
        %v413 = vld [vmem:[#allocation7 + $0x10] sm:$0xff]
        %v414 = vld [vmem:[#allocation7 + $0x18] sm:$0xff]
        %v415 = vld [vmem:[%s4] sm:$0x1]
        %v417 = vlaneseq
        %v418 = vshrl.u32 %v417, 7
        %v419 = vsub.s32 0, %v418
        %v420 = vrot.slane %v415, %v419
        %v423 = vsel %vm336, %v410, 0
        %425 = vmatprep.subr.mxu0 0.0
        %426 = vmatpush1.msra.mxu0 %v411
        %427 = vmatprep.subr.mxu0 0.0
        %428 = vmatpush1.msra.mxu0 %v412
        %429 = vmatprep.subr.mxu0 0.0
        %430 = vmatpush1.msra.mxu0 %v413
        %431 = vmatprep.subr.mxu0 0.0
        %432 = vmatpush1.msra.mxu0 %v414
        %433 = vmatprep.subr.mxu0 0.0
        %434 = vmatpush1.msra.mxu0 0.0
        %435 = vmatprep.subr.mxu0 0.0
        %436 = vmatpush1.msra.mxu0 0.0
        %437 = vmatprep.subr.mxu0 0.0
        %438 = vmatpush1.msra.mxu0 0.0
        %439 = vmatprep.subr.mxu0 0.0
        %440 = vmatpush1.msra.mxu0 0.0
        %441 = vmatprep.subr.mxu0 0.0
        %442 = vmatpush1.msra.mxu0 0.0
        %443 = vmatprep.subr.mxu0 0.0
        %444 = vmatpush1.msra.mxu0 0.0
        %445 = vmatprep.subr.mxu0 0.0
        %446 = vmatpush1.msra.mxu0 0.0
        %447 = vmatprep.subr.mxu0 0.0
        %448 = vmatpush1.msra.mxu0 0.0
        %449 = vmatprep.subr.mxu0 0.0
        %450 = vmatpush1.msra.mxu0 0.0
        %451 = vmatprep.subr.mxu0 0.0
        %452 = vmatpush1.msra.mxu0 0.0
        %453 = vmatprep.subr.mxu0 0.0
        %454 = vmatpush1.msra.mxu0 0.0
        %455 = vmatprep.subr.mxu0 0.0
        %456 = vmatpush1.msra.mxu0 0.0
        %457 = vmatprep.subr.mxu0 0.0
        %458 = vmatpush1.msra.mxu0 0.0
        %459 = vmatprep.subr.mxu0 0.0
        %460 = vmatpush1.msra.mxu0 0.0
        %461 = vmatprep.subr.mxu0 0.0
        %462 = vmatpush1.msra.mxu0 0.0
        %463 = vmatprep.subr.mxu0 0.0
        %464 = vmatpush1.msra.mxu0 0.0
        %465 = vmatprep.subr.mxu0 0.0
        %466 = vmatpush1.msra.mxu0 0.0
        %467 = vmatprep.subr.mxu0 0.0
        %468 = vmatpush1.msra.mxu0 0.0
        %469 = vmatprep.subr.mxu0 0.0
        %470 = vmatpush1.msra.mxu0 0.0
        %471 = vmatprep.subr.mxu0 0.0
        %472 = vmatpush1.msra.mxu0 0.0
        %473 = vmatprep.subr.mxu0 0.0
        %474 = vmatpush1.msra.mxu0 0.0
        %475 = vmatprep.subr.mxu0 0.0
        %476 = vmatpush1.msra.mxu0 0.0
        %477 = vmatprep.subr.mxu0 0.0
        %478 = vmatpush1.msra.mxu0 0.0
        %479 = vmatprep.subr.mxu0 0.0
        %480 = vmatpush1.msra.mxu0 0.0
        %481 = vmatprep.subr.mxu0 0.0
        %482 = vmatpush1.msra.mxu0 0.0
        %483 = vmatprep.subr.mxu0 0.0
        %484 = vmatpush1.msra.mxu0 0.0
        %485 = vmatprep.subr.mxu0 0.0
        %486 = vmatpush1.msra.mxu0 0.0
        %487 = vmatprep.subr.mxu0 0.0
        %488 = vmatpush1.msra.mxu0 0.0
        %489 = vmatprep.mubr.f32.mxu0 0.0
        %490 = vmatmul.mubr.f32.gmra.mrb[0].mxu0 %v423
        %v491 = vpop.f32.mrb[0].mxu0
        %v492 = vadd.f32 %v420, %v491
        %v493 = vpop.f32.mrb[0].mxu0
        %494 = vdwg.mxu0
        %v495 = vmax.f32 %v492, 0.0
        %v496 = vld [vmem:[%s5] sm:$0x1]
        %v498 = vlaneseq
        %v499 = vshrl.u32 %v498, 7
        %v500 = vsub.s32 0, %v499
        %v501 = vrot.slane %v496, %v500
        %v503 = vmul.f32 %v495, %v501
        %v504 = vsel %vm336, %v503, 0.0
        %505 = vadd.xlane.f32.xlu0 %v504
        %v506 = vpop.xlane.xlu0 %505
        %s507 = sld [smem:[#allocation2]]
        %v508 = vstv %s507
        %v509 = vadd.f32 %v506, %v508
        %vm510 = vcmask 7168
        %511 = vst.msk [vmem:[%s323] sm:$0xff] %vm510, %v509
        %p512 = scmp.lt.s32.totalorder %s23, 1
        %s513 = scalar_select %p512, %s23, 1
        %s514 = smul.addr %s513, 8
        %s515 = scalar_lea.vmem %s7, %s514
        // Predicated region
        $region61: #{tpu_custom_call.1} parent=47 // pred_check
          %p516 = pneg %p193
        $region62: #{tpu_custom_call.1} parent=47 // pred_check_branch
          %518 = sbr.rel (%p516) target = $region64
        $region63: #{tpu_custom_call.1} parent=47 // pred_region
          _
        $region64: #{tpu_custom_call.1} parent=47 // pred_fallthru
          _
      $region48: #{tpu_custom_call.1} parent=5 // pred_fallthru
        _
      %p519 = scmp.le.s32.totalorder 2, %s18
      // Predicated region
      $region65: #{tpu_custom_call.1} parent=5 // pred_check
        %p520 = pneg %p519
      $region66: #{tpu_custom_call.1} parent=5 // pred_check_branch
        %522 = sbr.rel (%p520) target = $region68
      $region67: #{tpu_custom_call.1} parent=5 // pred_region
        %s523 = ssub.s32 %s18, 2
        // Predicated region
        $region69: #{tpu_custom_call.1} parent=67 // pred_check
          %p524 = pneg %p199
        $region70: #{tpu_custom_call.1} parent=67 // pred_check_branch
          %526 = sbr.rel (%p524) target = $region72
        $region71: #{tpu_custom_call.1} parent=67 // pred_region
          %p527 = scmp.lt.s32.totalorder %s24, 1
          %s528 = scalar_select %p527, %s24, 1
          %s529 = smul.addr %s528, 8
          %s530 = scalar_lea.vmem %s7, %s529
        $region72: #{tpu_custom_call.1} parent=67 // pred_fallthru
          _
      $region68: #{tpu_custom_call.1} parent=5 // pred_fallthru
        _
    $region6: #{tpu_custom_call.1} parent=1 // loop_footer
      %s22 = sadd.s32 1, %s18
    $region7: #{tpu_custom_call.1} parent=1 // loop_footer_branch
      %17 = sbr.rel target = $region3
    $region8: #{tpu_custom_call.1} parent=1 // loop_exit
      _
    %531 = vsyncpa [#allocation4], 1
    %s532 = scalar_lea.sflag [#allocation4], 1
    %533 = vsyncpa %s532, 1
    %534 = vsyncpa [#allocation6], 1

</llo_original>
